<compile_context>
chip_gen: v6e
topology: v6e:2x2x1
jax: 0.10.0
libtpu: 0.0.40
codegen_flags: <defaults>
</compile_context>

<pallas_src>
import functools

import jax
import jax.numpy as jnp
import numpy as np
from jax.experimental import pallas as pl
from jax.experimental.pallas import tpu as pltpu


_META_LANES = 128                 # packed meta output width (one full vreg row)
_COL_SEL, _COL_RANK, _COL_FLAT = 0, 1, 2


def _round_up(x, m):
    return ((x + m - 1) // m) * m


def _next_pow2(x):
    return 1 << max(int(x) - 1, 0).bit_length()


def _select_core(nn_ref, unq_ref, ex_ref, aug_ref, rank_ref, key_ref, *,
                 A, S, PA, F, fuse_payload):
    """Per-unique uniform masked pick + payload gathers (VPU/XLU only)."""
    Up = unq_ref.shape[0]
    Mp = nn_ref.shape[1]
    Bp = ex_ref.shape[1]

    nn = nn_ref[...]                                    # (1, Mp)  int32
    unq = unq_ref[...]                                  # (Up, 1)  int32
    mask = nn == unq                                    # (Up, Mp) self_mask

    # Fused "multinomial": one masked cross-lane max over keys = rand*S + col,
    # winning column decoded from the low log2(S) bits.  Keys of distinct
    # columns never tie; equal-rand collisions resolve to the higher column —
    # bias is O(M / (2^31 / S)), negligible for realistic M.
    col = jax.lax.broadcasted_iota(jnp.int32, (Up, Mp), 1)
    keys = jnp.where(mask, key_ref[...] * S + col, -1)
    kmax = jnp.max(keys, axis=-1, keepdims=True)        # XLU reduction 1
    sel = jnp.bitwise_and(kmax, S - 1)                  # (Up, 1) selected column

    oh = col == sel                                     # one-hot over columns
    if fuse_payload:
        pa_bits = PA.bit_length() - 1
        payload = rank_ref[...] * PA + aug_ref[...]     # (1, Mp)
        p_sel = jnp.sum(jnp.where(oh, payload, 0), axis=-1, keepdims=True)  # XLU 2
        r_sel = jnp.right_shift(p_sel, pa_bits)         # nn_ranks[sel]
        a_sel = jnp.bitwise_and(p_sel, PA - 1)          # augmented_indices[sel]
    else:
        a_sel = jnp.sum(jnp.where(oh, aug_ref[...], 0), axis=-1, keepdims=True)
        r_sel = jnp.sum(jnp.where(oh, rank_ref[...], 0), axis=-1, keepdims=True)

    # example_indices[nn_mask[sel]] == example_indices[unq].
    bcol = jax.lax.broadcasted_iota(jnp.int32, (Up, Bp), 1)
    e_sel = jnp.sum(jnp.where(bcol == unq, ex_ref[...], 0), axis=-1, keepdims=True)

    # Flat row into the FULL (N*A, C) teacher buffer; "+1" folds the [:, 1:]
    # slice.  clip only protects padded rows from OOB indexing/DMA — inputs that
    # torch's [:, 1:] view would reject (aug == A-1) would have raised there.
    flat = jnp.clip(e_sel * A + (a_sel + 1), 0, F - 1)
    return sel, r_sel, flat


def _pack_meta(sel, r_sel, flat):
    """Lane-dense packed meta: col 0 = sel, col 1 = rank, col 2 = flat."""
    Up = sel.shape[0]
    lane = jax.lax.broadcasted_iota(jnp.int32, (Up, _META_LANES), 1)
    return (jnp.where(lane == _COL_SEL, sel, 0)
            + jnp.where(lane == _COL_RANK, r_sel, 0)
            + jnp.where(lane == _COL_FLAT, flat, 0))


def _fused_kernel(nn_ref, unq_ref, ex_ref, aug_ref, rank_ref, key_ref, tea_ref,
                  meta_ref, tea_out_ref, **static):
    sel, r_sel, flat = _select_core(nn_ref, unq_ref, ex_ref, aug_ref, rank_ref,
                                    key_ref, **static)
    meta_ref[...] = _pack_meta(sel, r_sel, flat)

    # One-hot gather of the selected teacher rows on the (otherwise idle) MXU:
    # (Up, F) @ (F, C) with the table VMEM-resident (whole-array BlockSpec).
    Fdim = tea_ref.shape[0]
    fcol = jax.lax.broadcasted_iota(jnp.int32, (sel.shape[0], Fdim), 1)
    oh_f = (fcol == flat).astype(tea_ref.dtype)
    tea_out_ref[...] = jnp.dot(
        oh_f, tea_ref[...], preferred_element_type=jnp.float32
    ).astype(tea_out_ref.dtype)


def _select_kernel(nn_ref, unq_ref, ex_ref, aug_ref, rank_ref, key_ref,
                   meta_ref, **static):
    sel, r_sel, flat = _select_core(nn_ref, unq_ref, ex_ref, aug_ref, rank_ref,
                                    key_ref, **static)
    meta_ref[...] = _pack_meta(sel, r_sel, flat)


def _gather_kernel(flat_ref, t_ref, o_ref):
    # One selected teacher row per grid step; the row is DMA'd in by the
    # data-dependent index_map (scalar-prefetch gather), multiple rows in flight.
    del flat_ref
    o_ref[...] = t_ref[...]


def random_glitter_forward(teacher_logits, stu_logits, augment_rank, nn_mask,
                           example_indices, augmented_indices, nn_ranks,
                           rng=None, seed=0, force_hbm_gather=False,
                           table_vmem_budget=24 * 1024 * 1024):
    """Mirrors RandomGlitterForSequenceClassification.forward.

    teacher_logits: raw buffer [N, A, C]; the torch module registers
    teacher_logits[:, 1:] — here the +1 offset is folded into the gather index
    instead of materialising a sliced HBM copy.
    Returns (selected_neighbors, selected_ranks, teacher_logits_selected).

    NOTE: torch.multinomial draws fresh randomness each forward; pass a fresh
    `rng` (jax.random key) or a distinct `seed` per call, or selections repeat.
    """
    del stu_logits, augment_rank            # unused by the torch forward as well

    teacher_logits = jnp.asarray(teacher_logits)
    N, A, C = teacher_logits.shape
    F = N * A

    # Host-side shape/unique prep (exactly like torch.unique).  This forces a
    # device->host sync if nn_mask lives on device; hoist out of any jitted hot
    # path.  # TODO(synk): device-side unique (sort + adjacent diff) with a
    # static U_max bucket to avoid the sync + shape-dependent recompiles.
    nn_np = np.asarray(nn_mask).astype(np.int32)
    aug_np = np.asarray(augmented_indices).astype(np.int32)
    rank_np = np.asarray(nn_ranks).astype(np.int32)
    ex_np = np.asarray(example_indices).astype(np.int32)

    M = int(nn_np.shape[0])
    Mp = _round_up(max(M, 128), 128)                  # lane-align candidate axis
    S = _next_pow2(Mp)                                # pow2 >= Mp (column decode)
    key_hi = max(2, (2 ** 31 - 1) // S)               # keep rand*S + col in int32

    unq_np = np.unique(nn_np)
    U = int(unq_np.shape[0])
    Up = _round_up(max(U, 8), 8)                      # sublane-align unique axis
    B = int(ex_np.shape[0])
    Bp = _round_up(max(B, 1), 128)

    # Fuse the aug/rank one-hot gathers into one reduction when the packed
    # payload provably fits int32 (ranks are typically tiny, so it always does).
    PA = _next_pow2(max(A, (int(aug_np.max()) + 1) if M else A))
    fuse_payload = bool(
        M > 0 and rank_np.min() >= 0 and aug_np.min() >= 0
        and int(rank_np.max()) * PA + (PA - 1) < 2 ** 31)

    def pad_lane(v, n, fill):
        out = np.full((1, n), fill, np.int32)
        out[0, : v.shape[0]] = v.reshape(-1)
        return jnp.asarray(out)

    nn_2d = pad_lane(nn_np, Mp, -2)                   # -2 never matches a unique
    aug_2d = pad_lane(aug_np, Mp, 0)
    rank_2d = pad_lane(rank_np, Mp, 0)
    ex_2d = pad_lane(ex_np, Bp, 0)

    unq_pad = np.full((Up, 1), -1, np.int32)          # -1 sentinel: matches nothing
    unq_pad[:U, 0] = unq_np
    unq_2d = jnp.asarray(unq_pad)

    # Randomness: each column gets an independent key; masked column sets are
    # disjoint across unique values, so one key vector gives independent picks.
    if rng is None:
        rng = jax.random.PRNGKey(seed)
    rkeys = jax.random.randint(rng, (1, Mp), 0, key_hi, dtype=jnp.int32)

    statics = dict(A=A, S=S, PA=PA, F=F, fuse_payload=fuse_payload)
    vmem = pl.BlockSpec(memory_space=pltpu.MemorySpace.VMEM)

    table_bytes = int(F * C * teacher_logits.dtype.itemsize)
    onehot_bytes = int(Up * F * 4)
    use_vmem_table = (not force_hbm_gather
                      and table_bytes + onehot_bytes <= table_vmem_budget)

    if use_vmem_table:
        # ---- fused single kernel: selection + MXU one-hot row gather --------
        # Raise the scoped-VMEM limit (v5e defaults to 16 MiB) but cap at
        # 48 MiB so it stays safe within v7x's 64 MiB physical VMEM.
        vmem_limit = min(48 << 20,
                         max(32 << 20,
                             2 * (table_bytes + onehot_bytes) + (4 << 20)))
        meta, tea_sel = pl.pallas_call(
            functools.partial(_fused_kernel, **statics),
            out_shape=(
                jax.ShapeDtypeStruct((Up, _META_LANES), jnp.int32),
                jax.ShapeDtypeStruct((Up, C), teacher_logits.dtype),
            ),
            in_specs=[vmem] * 7,
            out_specs=(vmem, vmem),
            compiler_params=pltpu.CompilerParams(vmem_limit_bytes=int(vmem_limit)),
        )(nn_2d, unq_2d, ex_2d, aug_2d, rank_2d, rkeys,
          teacher_logits.reshape(F, C))
        tea_out = tea_sel[:U]
    else:
        # ---- fallback (table too big for VMEM): select + true HBM row gather
        meta = pl.pallas_call(
            functools.partial(_select_kernel, **statics),
            out_shape=jax.ShapeDtypeStruct((Up, _META_LANES), jnp.int32),
            in_specs=[vmem] * 6,
            out_specs=vmem,
        )(nn_2d, unq_2d, ex_2d, aug_2d, rank_2d, rkeys)

        flat = meta[:U, _COL_FLAT]                    # (U,) int32 row ids
        gather_map = lambda i, flat_ref: (flat_ref[i], 0, 0)
        try:                                          # keep 4 row DMAs in flight
            row_spec = pl.BlockSpec((1, 1, C), gather_map,
                                    pipeline_mode=pl.Buffered(max(2, min(4, U))))
        except (TypeError, AttributeError):
            row_spec = pl.BlockSpec((1, 1, C), gather_map)
        tea_sel = pl.pallas_call(
            _gather_kernel,
            out_shape=jax.ShapeDtypeStruct((U, 1, C), teacher_logits.dtype),
            grid_spec=pltpu.PrefetchScalarGridSpec(
                num_scalar_prefetch=1,
                grid=(U,),                            # no padded/wasted steps
                in_specs=[row_spec],
                out_specs=pl.BlockSpec((1, 1, C), lambda i, flat_ref: (i, 0, 0)),
            ),
            compiler_params=pltpu.CompilerParams(
                dimension_semantics=("parallel",)),   # dual-TC on v7x megacore
        )(flat, teacher_logits.reshape(F, 1, C))
        tea_out = tea_sel[:, 0, :]

    return meta[:U, _COL_SEL], meta[:U, _COL_RANK], tea_out


if __name__ == "__main__":
    key = jax.random.PRNGKey(0)
    k1, k2, k3, k4, k5 = jax.random.split(key, 5)

    # small, module-consistent shapes
    N, A, C = 16, 5, 8       # teacher buffer: 16 examples, 5 augments, 8 classes
    B = 4                    # in-batch examples (what nn_mask values index into)
    M = 8                    # number of neighbour candidates

    teacher_logits = jax.random.normal(k1, (N, A, C), dtype=jnp.float32)
    stu_logits = jax.random.normal(k2, (M, C), dtype=jnp.float32)          # unused
    nn_mask = jnp.array([0, 0, 1, 2, 2, 3, 3, 3], dtype=jnp.int32)         # values in [0, B)
    example_indices = jax.random.randint(k3, (B,), 0, N, dtype=jnp.int32)
    augmented_indices = jax.random.randint(k4, (M,), 0, A - 1, dtype=jnp.int32)
    nn_ranks = jnp.arange(10, 10 + M, dtype=jnp.int32)

    # numpy reference, mirroring the torch indexing
    nn_np = np.asarray(nn_mask)
    unq_np = np.unique(nn_np)
    tea_ref_full = np.asarray(teacher_logits)[:, 1:, :][
        np.asarray(example_indices)[nn_np], np.asarray(augmented_indices), :]

    results = {}
    for name, force_hbm in (("vmem_fused", False), ("hbm_gather", True)):
        sel, sel_ranks, tea_sel = random_glitter_forward(
            teacher_logits, stu_logits, 1, nn_mask, example_indices,
            augmented_indices, nn_ranks, rng=k5, force_hbm_gather=force_hbm)
        jax.block_until_ready((sel, sel_ranks, tea_sel))

        sel_np = np.asarray(sel)
        assert sel_np.shape == unq_np.shape
        # each selected index must point to a position carrying that unique value
        assert np.all(nn_np[sel_np] == unq_np), name
        # selected_ranks == nn_ranks[selected_indices]
        np.testing.assert_array_equal(np.asarray(sel_ranks),
                                      np.asarray(nn_ranks)[sel_np])
        # teacher_logits == teacher_logits[:,1:][example_indices[nn_mask],
        #                                        augmented_indices][sel]
        np.testing.assert_allclose(np.asarray(tea_sel), tea_ref_full[sel_np],
                                   rtol=1e-6, atol=1e-6)
        results[name] = sel_np

    # both paths consume the same random keys -> identical selections
    np.testing.assert_array_equal(results["vmem_fused"], results["hbm_gather"])

    print("KERNEL_OK")
</pallas_src>

<mosaic_0001>
module attributes {stable_mosaic.version = 11 : i64} {
  func.func @_fused_kernel(%arg0: memref<1x128xi32, #tpu.memory_space<vmem>>, %arg1: memref<8x1xi32, #tpu.memory_space<vmem>>, %arg2: memref<1x128xi32, #tpu.memory_space<vmem>>, %arg3: memref<1x128xi32, #tpu.memory_space<vmem>>, %arg4: memref<1x128xi32, #tpu.memory_space<vmem>>, %arg5: memref<1x128xi32, #tpu.memory_space<vmem>>, %arg6: memref<80x8xf32, #tpu.memory_space<vmem>>, %arg7: memref<8x128xi32, #tpu.memory_space<vmem>>, %arg8: memref<8x8xf32, #tpu.memory_space<vmem>>) attributes {dimension_semantics = [], scalar_prefetch = 0 : i64, scratch_operands = 0 : i64, tpu.core_type = #tpu.core_type<tc>} {
    %c0 = arith.constant 0 : index
    %c0_0 = arith.constant 0 : index
    %0 = vector.load %arg0[%c0, %c0_0] : memref<1x128xi32, #tpu.memory_space<vmem>>, vector<1x128xi32>
    %c0_1 = arith.constant 0 : index
    %c0_2 = arith.constant 0 : index
    %1 = vector.load %arg1[%c0_1, %c0_2] : memref<8x1xi32, #tpu.memory_space<vmem>>, vector<8x1xi32>
    %2 = vector.broadcast %0 : vector<1x128xi32> to vector<8x128xi32>
    %3 = vector.broadcast %1 : vector<8x1xi32> to vector<8x128xi32>
    %4 = arith.cmpi eq, %2, %3 : vector<8x128xi32>
    %5 = tpu.iota {dimensions = array<i32: 1>} : vector<8x128xi32>
    %c0_3 = arith.constant 0 : index
    %c0_4 = arith.constant 0 : index
    %6 = vector.load %arg5[%c0_3, %c0_4] : memref<1x128xi32, #tpu.memory_space<vmem>>, vector<1x128xi32>
    %c128_i32 = arith.constant 128 : i32
    %7 = vector.broadcast %c128_i32 : i32 to vector<1x128xi32>
    %8 = arith.muli %6, %7 : vector<1x128xi32>
    %9 = vector.broadcast %8 : vector<1x128xi32> to vector<8x128xi32>
    %10 = arith.addi %9, %5 : vector<8x128xi32>
    %c-1_i32 = arith.constant -1 : i32
    %11 = vector.broadcast %c-1_i32 : i32 to vector<8x128xi32>
    %12 = arith.select %4, %10, %11 : vector<8x128xi1>, vector<8x128xi32>
    %cst = arith.constant dense<-2147483648> : vector<8xi32>
    %13 = vector.multi_reduction <maxsi>, %12, %cst [1] : vector<8x128xi32> to vector<8xi32>
    %14 = vector.shape_cast %13 : vector<8xi32> to vector<8x1xi32>
    %c127_i32 = arith.constant 127 : i32
    %15 = vector.broadcast %c127_i32 : i32 to vector<8x1xi32>
    %16 = arith.andi %14, %15 : vector<8x1xi32>
    %17 = vector.broadcast %16 : vector<8x1xi32> to vector<8x128xi32>
    %18 = arith.cmpi eq, %5, %17 : vector<8x128xi32>
    %c0_5 = arith.constant 0 : index
    %c0_6 = arith.constant 0 : index
    %19 = vector.load %arg4[%c0_5, %c0_6] : memref<1x128xi32, #tpu.memory_space<vmem>>, vector<1x128xi32>
    %c8_i32 = arith.constant 8 : i32
    %20 = vector.broadcast %c8_i32 : i32 to vector<1x128xi32>
    %21 = arith.muli %19, %20 : vector<1x128xi32>
    %c0_7 = arith.constant 0 : index
    %c0_8 = arith.constant 0 : index
    %22 = vector.load %arg3[%c0_7, %c0_8] : memref<1x128xi32, #tpu.memory_space<vmem>>, vector<1x128xi32>
    %23 = arith.addi %21, %22 : vector<1x128xi32>
    %c0_i32 = arith.constant 0 : i32
    %24 = vector.shape_cast %23 : vector<1x128xi32> to vector<1x128xi32>
    %25 = vector.broadcast %24 : vector<1x128xi32> to vector<8x128xi32>
    %26 = vector.broadcast %c0_i32 : i32 to vector<8x128xi32>
    %27 = arith.select %18, %25, %26 : vector<8x128xi1>, vector<8x128xi32>
    %cst_9 = arith.constant dense<0> : vector<8xi32>
    %28 = vector.multi_reduction <add>, %27, %cst_9 [1] : vector<8x128xi32> to vector<8xi32>
    %29 = vector.shape_cast %28 : vector<8xi32> to vector<8x1xi32>
    %c3_i32 = arith.constant 3 : i32
    %30 = vector.broadcast %c3_i32 : i32 to vector<8x1xi32>
    %31 = arith.shrsi %29, %30 : vector<8x1xi32>
    %c7_i32 = arith.constant 7 : i32
    %32 = vector.broadcast %c7_i32 : i32 to vector<8x1xi32>
    %33 = arith.andi %29, %32 : vector<8x1xi32>
    %34 = tpu.iota {dimensions = array<i32: 1>} : vector<8x128xi32>
    %35 = vector.broadcast %1 : vector<8x1xi32> to vector<8x128xi32>
    %36 = arith.cmpi eq, %34, %35 : vector<8x128xi32>
    %c0_10 = arith.constant 0 : index
    %c0_11 = arith.constant 0 : index
    %37 = vector.load %arg2[%c0_10, %c0_11] : memref<1x128xi32, #tpu.memory_space<vmem>>, vector<1x128xi32>
    %c0_i32_12 = arith.constant 0 : i32
    %38 = vector.shape_cast %37 : vector<1x128xi32> to vector<1x128xi32>
    %39 = vector.broadcast %38 : vector<1x128xi32> to vector<8x128xi32>
    %40 = vector.broadcast %c0_i32_12 : i32 to vector<8x128xi32>
    %41 = arith.select %36, %39, %40 : vector<8x128xi1>, vector<8x128xi32>
    %cst_13 = arith.constant dense<0> : vector<8xi32>
    %42 = vector.multi_reduction <add>, %41, %cst_13 [1] : vector<8x128xi32> to vector<8xi32>
    %43 = vector.shape_cast %42 : vector<8xi32> to vector<8x1xi32>
    %c5_i32 = arith.constant 5 : i32
    %44 = vector.broadcast %c5_i32 : i32 to vector<8x1xi32>
    %45 = arith.muli %43, %44 : vector<8x1xi32>
    %c1_i32 = arith.constant 1 : i32
    %46 = vector.broadcast %c1_i32 : i32 to vector<8x1xi32>
    %47 = arith.addi %33, %46 : vector<8x1xi32>
    %48 = arith.addi %45, %47 : vector<8x1xi32>
    %c0_i32_14 = arith.constant 0 : i32
    %c79_i32 = arith.constant 79 : i32
    %49 = vector.broadcast %c0_i32_14 : i32 to vector<8x1xi32>
    %50 = arith.maxsi %49, %48 : vector<8x1xi32>
    %51 = vector.broadcast %c79_i32 : i32 to vector<8x1xi32>
    %52 = arith.minsi %51, %50 : vector<8x1xi32>
    %53 = tpu.iota {dimensions = array<i32: 1>} : vector<8x128xi32>
    %c0_i32_15 = arith.constant 0 : i32
    %54 = vector.broadcast %c0_i32_15 : i32 to vector<8x128xi32>
    %55 = arith.cmpi eq, %53, %54 : vector<8x128xi32>
    %c0_i32_16 = arith.constant 0 : i32
    %56 = vector.shape_cast %16 : vector<8x1xi32> to vector<8x1xi32>
    %57 = vector.broadcast %56 : vector<8x1xi32> to vector<8x128xi32>
    %58 = vector.broadcast %c0_i32_16 : i32 to vector<8x128xi32>
    %59 = arith.select %55, %57, %58 : vector<8x128xi1>, vector<8x128xi32>
    %c1_i32_17 = arith.constant 1 : i32
    %60 = vector.broadcast %c1_i32_17 : i32 to vector<8x128xi32>
    %61 = arith.cmpi eq, %53, %60 : vector<8x128xi32>
    %c0_i32_18 = arith.constant 0 : i32
    %62 = vector.shape_cast %31 : vector<8x1xi32> to vector<8x1xi32>
    %63 = vector.broadcast %62 : vector<8x1xi32> to vector<8x128xi32>
    %64 = vector.broadcast %c0_i32_18 : i32 to vector<8x128xi32>
    %65 = arith.select %61, %63, %64 : vector<8x128xi1>, vector<8x128xi32>
    %66 = arith.addi %59, %65 : vector<8x128xi32>
    %c2_i32 = arith.constant 2 : i32
    %67 = vector.broadcast %c2_i32 : i32 to vector<8x128xi32>
    %68 = arith.cmpi eq, %53, %67 : vector<8x128xi32>
    %c0_i32_19 = arith.constant 0 : i32
    %69 = vector.shape_cast %52 : vector<8x1xi32> to vector<8x1xi32>
    %70 = vector.broadcast %69 : vector<8x1xi32> to vector<8x128xi32>
    %71 = vector.broadcast %c0_i32_19 : i32 to vector<8x128xi32>
    %72 = arith.select %68, %70, %71 : vector<8x128xi1>, vector<8x128xi32>
    %73 = arith.addi %66, %72 : vector<8x128xi32>
    %c0_20 = arith.constant 0 : index
    %c0_21 = arith.constant 0 : index
    %74 = vector.load %arg7[%c0_20, %c0_21] : memref<8x128xi32, #tpu.memory_space<vmem>>, vector<8x128xi32>
    tpu.vector_store %arg7[%c0_20, %c0_21], %73 {strides = array<i32>} : memref<8x128xi32, #tpu.memory_space<vmem>>, vector<8x128xi32>,
    %75 = tpu.iota {dimensions = array<i32: 1>} : vector<8x80xi32>
    %76 = vector.broadcast %52 : vector<8x1xi32> to vector<8x80xi32>
    %77 = arith.cmpi eq, %75, %76 : vector<8x80xi32>
    %78 = arith.extui %77 : vector<8x80xi1> to vector<8x80xi32>
    %79 = arith.sitofp %78 : vector<8x80xi32> to vector<8x80xf32>
    %c0_22 = arith.constant 0 : index
    %c0_23 = arith.constant 0 : index
    %80 = vector.load %arg6[%c0_22, %c0_23] : memref<80x8xf32, #tpu.memory_space<vmem>>, vector<80x8xf32>
    %cst_24 = arith.constant dense<0.000000e+00> : vector<8x8xf32>
    %81 = tpu.matmul %79, %80, %cst_24 {dimension_numbers = #tpu.dot_dimension_numbers<[1], [0], [0], [1], [0, 0, 1, 1], [], []>} : vector<8x80xf32>, vector<80x8xf32>, vector<8x8xf32> -> vector<8x8xf32>
    %c0_25 = arith.constant 0 : index
    %c0_26 = arith.constant 0 : index
    %82 = vector.load %arg8[%c0_25, %c0_26] : memref<8x8xf32, #tpu.memory_space<vmem>>, vector<8x8xf32>
    tpu.vector_store %arg8[%c0_25, %c0_26], %81 {strides = array<i32>} : memref<8x8xf32, #tpu.memory_space<vmem>>, vector<8x8xf32>,
    return
  }
}

</mosaic_0001>

<llo_original>
// kernel: tpu_custom_call.1
$region0: #{tpu_custom_call.1}
  #allocation0 [shape = 'u32[]', space=smem, size = 0x4, offset = 0x4, fixed_abs, tag = 'smem constant byte address 0x4 - core index']
  #allocation1 [shape = 'u32[144,128]{1,0:T(1,128)}', space=vmem, size = 0x12000, scoped, tag = 'internal scratch']
  %s0 = inlined_call_operand.vmem [shape: s32[1,128], index: 0, kind: input, shape index: {}]
  %s1 = inlined_call_operand.vmem [shape: s32[8,1], index: 1, kind: input, shape index: {}]
  %s2 = inlined_call_operand.vmem [shape: s32[1,128], index: 2, kind: input, shape index: {}]
  %s3 = inlined_call_operand.vmem [shape: s32[1,128], index: 3, kind: input, shape index: {}]
  %s4 = inlined_call_operand.vmem [shape: s32[1,128], index: 4, kind: input, shape index: {}]
  %s5 = inlined_call_operand.vmem [shape: s32[1,128], index: 5, kind: input, shape index: {}]
  %s6 = inlined_call_operand.vmem [shape: f32[80,8], index: 6, kind: input, shape index: {}]
  %s7 = inlined_call_operand.hbm [shape: s32[8,128], index: 7, kind: output, shape index: {0}]
  %s8 = inlined_call_operand.hbm [shape: f32[8,8], index: 8, kind: output, shape index: {1}]
  %9 = xla_tuple %s7, %s8
  %s10 = sld [smem:[#allocation0]]
  $region46: #{tpu_custom_call.1} parent=0
    _
  %s12 = ssub.s32 1, %s10
  %s13 = scalar_select 0, %s12, %s10
  $region1: #{tpu_custom_call.1} parent=0
    #allocation2 [shape = 'u8[4096]{0}', space=vmem, size = 0x1000, scoped, tag = 'output window, operand 0, single buffered']
    #allocation3 [shape = 's32[1]{0}', space=sflag, size = 0x4, scoped, tag = 'scoped memory for tpu_custom_call.1']
    #allocation4 [shape = 'u8[4096]{0}', space=vmem, size = 0x1000, scoped, tag = 'output window, operand 1, single buffered']
    #allocation5 [shape = 's32[1]{0}', space=sflag, size = 0x4, scoped, tag = 'scoped memory for tpu_custom_call.1']
    %14 = vsyncpa [#allocation3], 0
    %15 = vsyncpa [#allocation5], 0
    // Predicated region
    $region2: #{tpu_custom_call.1} parent=1 // pred_check
      _
    $region3: #{tpu_custom_call.1} parent=1 // pred_check_branch
      %17 = sbr.rel (0) target = $region5
    $region4: #{tpu_custom_call.1} parent=1 // pred_region
      _
    $region5: #{tpu_custom_call.1} parent=1 // pred_fallthru
      _
    // Predicated region
    $region6: #{tpu_custom_call.1} parent=1 // pred_check
      _
    $region7: #{tpu_custom_call.1} parent=1 // pred_check_branch
      %19 = sbr.rel (0) target = $region9
    $region8: #{tpu_custom_call.1} parent=1 // pred_region
      _
    $region9: #{tpu_custom_call.1} parent=1 // pred_fallthru
      _
    // Predicated region
    $region10: #{tpu_custom_call.1} parent=1 // pred_check
      _
    $region11: #{tpu_custom_call.1} parent=1 // pred_check_branch
      %21 = sbr.rel (0) target = $region13
    $region12: #{tpu_custom_call.1} parent=1 // pred_region
      _
    $region13: #{tpu_custom_call.1} parent=1 // pred_fallthru
      _
    // Predicated region
    $region14: #{tpu_custom_call.1} parent=1 // pred_check
      _
    $region15: #{tpu_custom_call.1} parent=1 // pred_check_branch
      %23 = sbr.rel (0) target = $region17
    $region16: #{tpu_custom_call.1} parent=1 // pred_region
      _
    $region17: #{tpu_custom_call.1} parent=1 // pred_fallthru
      _
    // Predicated region
    $region18: #{tpu_custom_call.1} parent=1 // pred_check
      _
    $region19: #{tpu_custom_call.1} parent=1 // pred_check_branch
      %25 = sbr.rel (0) target = $region21
    $region20: #{tpu_custom_call.1} parent=1 // pred_region
      _
    $region21: #{tpu_custom_call.1} parent=1 // pred_fallthru
      _
    // Predicated region
    $region22: #{tpu_custom_call.1} parent=1 // pred_check
      _
    $region23: #{tpu_custom_call.1} parent=1 // pred_check_branch
      %27 = sbr.rel (0) target = $region25
    $region24: #{tpu_custom_call.1} parent=1 // pred_region
      _
    $region25: #{tpu_custom_call.1} parent=1 // pred_fallthru
      _
    // Predicated region
    $region26: #{tpu_custom_call.1} parent=1 // pred_check
      _
    $region27: #{tpu_custom_call.1} parent=1 // pred_check_branch
      %29 = sbr.rel (0) target = $region29
    $region28: #{tpu_custom_call.1} parent=1 // pred_region
      _
    $region29: #{tpu_custom_call.1} parent=1 // pred_fallthru
      _
    %v30 = vld [vmem:[%s0] sm:$0x1]
    %v31 = vld [vmem:[%s1] sm:$0xff]
    %v32 = vlaneseq
    %v33 = vshrl.u32 %v32, 7
    %v34 = vsub.s32 0, %v33
    %v35 = vrot.slane %v30, %v34
    %36 = vset.pattern.permute.xlu0 0
    %37 = vperm.xlu0 %36, %v31
    %v38 = vpop.permute.xlu0 %37
    %vm39 = vcmp.eq.s32.totalorder %v35, %v38
    %v40 = vlaneseq
    %v41 = vand.u32 %v40, 127
    %v42 = vld [vmem:[%s5] sm:$0x1]
    %v43 = vmul.u32 %v42, 128
    %v44 = vlaneseq
    %v45 = vshrl.u32 %v44, 7
    %v46 = vsub.s32 0, %v45
    %v47 = vrot.slane %v43, %v46
    %v48 = vadd.s32 %v47, %v41
    %v49 = vsel %vm39, %v48, 4294967295
    %v50 = vand.u32 %v49, 65535
    %v51 = vshra.s32 %v49, 16
    %v52 = vcvt.s32.f32 %v50
    %v53 = vcvt.s32.f32 %v51
    %54 = vmax.xlane.f32.xlu0 %v53
    %v55 = vpop.xlane.xlu0 %54
    %vm56 = vcmp.eq.f32.partialorder %v53, %v55
    %v57 = vsel %vm56, %v52, -inf
    %58 = vmax.xlane.f32.xlu0 %v57
    %v59 = vpop.xlane.xlu0 %58
    %v60 = vcvt.f32.s32 %v59
    %v61 = vcvt.f32.s32 %v55
    %v62 = vshll.u32 %v61, 16
    %v63 = vadd.s32 %v62, %v60
    %v64 = vand.u32 %v63, 127
    %vm65 = vcmp.eq.s32.totalorder %v41, %v64
    %v66 = vld [vmem:[%s4] sm:$0x1]
    %v67 = vmul.u32 %v66, 8
    %v68 = vld [vmem:[%s3] sm:$0x1]
    %v69 = vadd.s32 %v67, %v68
    %v70 = vlaneseq
    %v71 = vshrl.u32 %v70, 7
    %v72 = vsub.s32 0, %v71
    %v73 = vrot.slane %v69, %v72
    %v74 = vsel %vm65, %v73, 0
    %v75 = vand.u32 %v74, 65535
    %v76 = vshrl.u32 %v74, 16
    %v77 = vcvt.s32.f32 %v75
    %v78 = vcvt.s32.f32 %v76
    %79 = vadd.xlane.f32.xlu0 %v77
    %v80 = vpop.xlane.xlu0 %79
    %81 = vadd.xlane.f32.xlu0 %v78
    %v82 = vpop.xlane.xlu0 %81
    %v83 = vcvt.f32.s32 %v80
    %v84 = vcvt.f32.s32 %v82
    %v85 = vshll.u32 %v84, 16
    %v86 = vadd.s32 %v85, %v83
    %v87 = vshra.s32 %v86, 3
    %v88 = vand.u32 %v86, 7
    %vm89 = vcmp.eq.s32.totalorder %v41, %v38
    %v90 = vld [vmem:[%s2] sm:$0x1]
    %v91 = vlaneseq
    %v92 = vshrl.u32 %v91, 7
    %v93 = vsub.s32 0, %v92
    %v94 = vrot.slane %v90, %v93
    %v95 = vsel %vm89, %v94, 0
    %v96 = vand.u32 %v95, 65535
    %v97 = vshrl.u32 %v95, 16
    %v98 = vcvt.s32.f32 %v96
    %v99 = vcvt.s32.f32 %v97
    %100 = vadd.xlane.f32.xlu0 %v98
    %v101 = vpop.xlane.xlu0 %100
    %102 = vadd.xlane.f32.xlu0 %v99
    %v103 = vpop.xlane.xlu0 %102
    %v104 = vcvt.f32.s32 %v101
    %v105 = vcvt.f32.s32 %v103
    %v106 = vshll.u32 %v105, 16
    %v107 = vadd.s32 %v106, %v104
    %v108 = vmul.u32 %v107, 5
    %v109 = vadd.s32 %v88, 1
    %v110 = vadd.s32 %v108, %v109
    %vm111 = vcmp.gt.s32.totalorder %v110, 0
    %v112 = vsel %vm111, %v110, 0
    %vm113 = vcmp.lt.s32.totalorder %v112, 79
    %v114 = vsel %vm113, %v112, 79
    %vm115 = vcmp.eq.s32.totalorder %v41, 0
    %v116 = vsel %vm115, %v64, 0
    %vm117 = vcmp.eq.s32.totalorder %v41, 1
    %v118 = vsel %vm117, %v87, 0
    %v119 = vadd.s32 %v116, %v118
    %vm120 = vcmp.eq.s32.totalorder %v41, 2
    %v121 = vsel %vm120, %v114, 0
    %v122 = vadd.s32 %v119, %v121
    %123 = vst [vmem:[#allocation2] sm:$0xff] %v122
    %vm124 = vcmp.eq.s32.totalorder %v41, %v114
    %v125 = vsel %vm124, 1, 0
    %v126 = vcvt.s32.f32 %v125
    %v127 = vld [vmem:[%s6] sm:$0xff]
    %v128 = vld [vmem:[%s6 + $0x8] sm:$0xff]
    %v129 = vld [vmem:[%s6 + $0x10] sm:$0xff]
    %v130 = vld [vmem:[%s6 + $0x18] sm:$0xff]
    %v131 = vld [vmem:[%s6 + $0x20] sm:$0xff]
    %v132 = vld [vmem:[%s6 + $0x28] sm:$0xff]
    %v133 = vld [vmem:[%s6 + $0x30] sm:$0xff]
    %v134 = vld [vmem:[%s6 + $0x38] sm:$0xff]
    %v135 = vld [vmem:[%s6 + $0x40] sm:$0xff]
    %v136 = vld [vmem:[%s6 + $0x48] sm:$0xff]
    %vm137 = vcmask 654336
    %v139 = vsel %vm137, %v126, 0
    %141 = vmatprep.subr.mxu0 0.0
    %142 = vmatpush1.msra.mxu0 0.0
    %143 = vmatprep.subr.mxu0 0.0
    %144 = vmatpush1.msra.mxu0 0.0
    %145 = vmatprep.subr.mxu0 0.0
    %146 = vmatpush1.msra.mxu0 0.0
    %147 = vmatprep.subr.mxu0 0.0
    %148 = vmatpush1.msra.mxu0 0.0
    %149 = vmatprep.subr.mxu0 0.0
    %150 = vmatpush1.msra.mxu0 0.0
    %151 = vmatprep.subr.mxu0 0.0
    %152 = vmatpush1.msra.mxu0 0.0
    %153 = vmatprep.subr.mxu0 0.0
    %154 = vmatpush1.msra.mxu0 %v136
    %155 = vmatprep.subr.mxu0 0.0
    %156 = vmatpush1.msra.mxu0 %v135
    %157 = vmatprep.subr.mxu0 0.0
    %158 = vmatpush1.msra.mxu0 %v134
    %159 = vmatprep.subr.mxu0 0.0
    %160 = vmatpush1.msra.mxu0 %v133
    %161 = vmatprep.subr.mxu0 0.0
    %162 = vmatpush1.msra.mxu0 %v132
    %163 = vmatprep.subr.mxu0 0.0
    %164 = vmatpush1.msra.mxu0 %v131
    %165 = vmatprep.subr.mxu0 0.0
    %166 = vmatpush1.msra.mxu0 %v130
    %167 = vmatprep.subr.mxu0 0.0
    %168 = vmatpush1.msra.mxu0 %v129
    %169 = vmatprep.subr.mxu0 0.0
    %170 = vmatpush1.msra.mxu0 %v128
    %171 = vmatprep.subr.mxu0 0.0
    %172 = vmatpush1.msra.mxu0 %v127
    %173 = vmatprep.subr.mxu0 0.0
    %174 = vmatpush2.msra.mxu0 0.0
    %175 = vmatprep.subr.mxu0 0.0
    %176 = vmatpush2.msra.mxu0 0.0
    %177 = vmatprep.subr.mxu0 0.0
    %178 = vmatpush2.msra.mxu0 0.0
    %179 = vmatprep.subr.mxu0 0.0
    %180 = vmatpush2.msra.mxu0 0.0
    %181 = vmatprep.subr.mxu0 0.0
    %182 = vmatpush2.msra.mxu0 0.0
    %183 = vmatprep.subr.mxu0 0.0
    %184 = vmatpush2.msra.mxu0 0.0
    %185 = vmatprep.subr.mxu0 0.0
    %186 = vmatpush2.msra.mxu0 0.0
    %187 = vmatprep.subr.mxu0 0.0
    %188 = vmatpush2.msra.mxu0 0.0
    %189 = vmatprep.subr.mxu0 0.0
    %190 = vmatpush2.msra.mxu0 0.0
    %191 = vmatprep.subr.mxu0 0.0
    %192 = vmatpush2.msra.mxu0 0.0
    %193 = vmatprep.subr.mxu0 0.0
    %194 = vmatpush2.msra.mxu0 0.0
    %195 = vmatprep.subr.mxu0 0.0
    %196 = vmatpush2.msra.mxu0 0.0
    %197 = vmatprep.subr.mxu0 0.0
    %198 = vmatpush2.msra.mxu0 0.0
    %199 = vmatprep.subr.mxu0 0.0
    %200 = vmatpush2.msra.mxu0 0.0
    %201 = vmatprep.subr.mxu0 0.0
    %202 = vmatpush2.msra.mxu0 0.0
    %203 = vmatprep.subr.mxu0 0.0
    %204 = vmatpush2.msra.mxu0 0.0
    %205 = vmatprep.mubr.f32.mxu0 0.0
    %206 = vmatmul.mubr.f32.gmra.mxu0 %v139
    %v207 = vpop.f32.mrf.mxu0
    %v208 = vadd.f32 0.0, %v207
    %v209 = vpop.f32.mrf.mxu0
    %210 = vdwg.mxu0
    %vm211 = vcmask 64512
    %212 = vst.msk [vmem:[#allocation4] sm:$0xff] %vm211, %v208
    // Predicated region
    $region30: #{tpu_custom_call.1} parent=1 // pred_check
      _
    $region31: #{tpu_custom_call.1} parent=1 // pred_check_branch
      %214 = sbr.rel (0) target = $region33
    $region32: #{tpu_custom_call.1} parent=1 // pred_region
      %s216 = ssub.s32 128, 128
      %217 = vsyncadd [#allocation3], %s216
      %s219 = sshll.u32 [#allocation2], 4
      %s220 = int_to_ptr.vmem [resolvable:$true] %s219
      %222 = dma.vmem_to_hbm [thread:$0]  %s220, 128, %s7, [#allocation3]
    $region33: #{tpu_custom_call.1} parent=1 // pred_fallthru
      _
    // Predicated region
    $region34: #{tpu_custom_call.1} parent=1 // pred_check
      _
    $region35: #{tpu_custom_call.1} parent=1 // pred_check_branch
      %224 = sbr.rel (0) target = $region37
    $region36: #{tpu_custom_call.1} parent=1 // pred_region
      %s226 = ssub.s32 128, 128
      %227 = vsyncadd [#allocation5], %s226
      %s229 = sshll.u32 [#allocation4], 4
      %s230 = int_to_ptr.vmem [resolvable:$true] %s229
      %232 = dma.vmem_to_hbm [thread:$0]  %s230, 128, %s8, [#allocation5]
    $region37: #{tpu_custom_call.1} parent=1 // pred_fallthru
      _
    // Predicated region
    $region38: #{tpu_custom_call.1} parent=1 // pred_check
      _
    $region39: #{tpu_custom_call.1} parent=1 // pred_check_branch
      %234 = sbr.rel (0) target = $region41
    $region40: #{tpu_custom_call.1} parent=1 // pred_region
      %235 = dma.done [#allocation3], 128
    $region41: #{tpu_custom_call.1} parent=1 // pred_fallthru
      _
    // Predicated region
    $region42: #{tpu_custom_call.1} parent=1 // pred_check
      _
    $region43: #{tpu_custom_call.1} parent=1 // pred_check_branch
      %237 = sbr.rel (0) target = $region45
    $region44: #{tpu_custom_call.1} parent=1 // pred_region
      %238 = dma.done [#allocation5], 128
    $region45: #{tpu_custom_call.1} parent=1 // pred_fallthru
      _
    %239 = vsyncpa [#allocation3], 1
    %240 = vsyncpa [#allocation5], 1

</llo_original>
